<compile_context>
chip_gen: v5e
topology: v5e:2x2
jax: 0.10.0
libtpu: 0.0.40
codegen_flags: <defaults>
</compile_context>

<pallas_src>
import jax
import jax.numpy as jnp
from jax.experimental import pallas as pl
from jax.experimental.pallas import tpu as pltpu

HIDDEN = 200  # fixed by the module: nn.Linear(input_size, 200)


def _round_up(n, m):
    return ((n + m - 1) // m) * m


def mlp_kernel(x_ref, w1_ref, b1_ref, w2_ref, b2_ref, o_ref):
    # Layer 1: [tB, D] @ [D, Hp] + [1, Hp], ReLU.  Zero-padded Hp columns
    # stay exactly 0 through bias+ReLU and are annihilated by the zero rows
    # padded into w2, so padding is numerically inert.
    h = jnp.dot(x_ref[...], w1_ref[...], preferred_element_type=jnp.float32)
    h = jnp.maximum(h + b1_ref[...], 0.0)
    # Layer 2: [tB, Hp] @ [Hp, C] + [1, C]
    out = jnp.dot(h.astype(w2_ref.dtype), w2_ref[...],
                  preferred_element_type=jnp.float32)
    o_ref[...] = (out + b2_ref[...]).astype(o_ref.dtype)


def prepare_params(w1, b1, w2, b2):
    """Pad the hidden dim once (200 -> 256).  Call at init, not per forward.

    w1: [D_in, H], b1: [H] or [1, H], w2: [H, C], b2: [C] or [1, C]
    (weights are stored transposed vs. PyTorch's [out, in] so the kernel does
    plain x @ W).
    """
    D_in, H = w1.shape
    C = w2.shape[1]
    Hp = _round_up(H, 128)  # 200 -> 256
    w1p = jnp.pad(w1, ((0, 0), (0, Hp - H)))
    b1p = jnp.pad(jnp.reshape(b1, (1, H)), ((0, 0), (0, Hp - H)))
    w2p = jnp.pad(w2, ((0, Hp - H), (0, 0)))
    b2p = jnp.reshape(b2, (1, C))
    return w1p, b1p, w2p, b2p


def neural_network_2_2_forward(x, w1p, b1p, w2p, b2p, *,
                               batch_tile=512, gridless_max_batch=512):
    """x: [B, D_in]; padded params from prepare_params()."""
    B, D_in = x.shape
    Hp = w1p.shape[1]
    C = w2p.shape[1]
    itemsize = jnp.dtype(x.dtype).itemsize

    cost = pl.CostEstimate(
        flops=2 * B * (D_in * Hp + Hp * C),
        transcendentals=0,
        bytes_accessed=itemsize * (B * D_in + D_in * Hp + Hp + Hp * C + C + B * C),
    )

    if B <= gridless_max_batch:
        # Small batch: single invocation, whole arrays resident in VMEM,
        # no grid / pipeline prologue / double buffering.
        vmem = pl.BlockSpec(memory_space=pltpu.MemorySpace.VMEM)
        return pl.pallas_call(
            mlp_kernel,
            out_shape=jax.ShapeDtypeStruct((B, C), x.dtype),
            in_specs=[vmem, vmem, vmem, vmem, vmem],
            out_specs=vmem,
            cost_estimate=cost,
        )(x, w1p, b1p, w2p, b2p)

    # Large batch: grid over batch rows, ragged last block (no x / out
    # padding).  Cap the tile at ceil(B/2) so there are always >= 2 grid
    # steps and v7x's 2 TensorCores both get work.
    tb = min(batch_tile, _round_up(pl.cdiv(B, 2), 8))
    tb = max(tb, 8)
    grid = pl.cdiv(B, tb)

    # Rough VMEM footprint: double-buffered x/out tiles + weights + f32 h.
    needed_vmem = itemsize * (2 * tb * D_in + 2 * tb * C
                              + 2 * (D_in * Hp + Hp + Hp * C + C)) + 4 * tb * Hp
    cp_kwargs = {"dimension_semantics": ("parallel",)}
    if needed_vmem > 12 * (1 << 20):  # above v5e's conservative 16 MiB default
        cp_kwargs["vmem_limit_bytes"] = int(min(needed_vmem * 3 // 2,
                                                48 * (1 << 20)))

    return pl.pallas_call(
        mlp_kernel,
        out_shape=jax.ShapeDtypeStruct((B, C), x.dtype),
        grid=(grid,),
        in_specs=[
            pl.BlockSpec((tb, D_in), lambda i: (i, 0)),      # x tile, pipelined
            pl.BlockSpec((D_in, Hp), lambda i: (0, 0)),      # weights resident
            pl.BlockSpec((1, Hp), lambda i: (0, 0)),
            pl.BlockSpec((Hp, C), lambda i: (0, 0)),
            pl.BlockSpec((1, C), lambda i: (0, 0)),
        ],
        out_specs=pl.BlockSpec((tb, C), lambda i: (i, 0)),
        compiler_params=pltpu.CompilerParams(**cp_kwargs),
        cost_estimate=cost,
    )(x, w1p, b1p, w2p, b2p)


def init_params(key, input_size, hidden, num_classes, dtype=jnp.float32):
    """Deterministic init mimicking PyTorch's default Linear init
    (uniform(-1/sqrt(fan_in), 1/sqrt(fan_in)))."""
    k1, k2, k3, k4 = jax.random.split(key, 4)
    bound1 = 1.0 / (input_size ** 0.5)
    bound2 = 1.0 / (hidden ** 0.5)
    w1 = jax.random.uniform(k1, (input_size, hidden), dtype,
                            minval=-bound1, maxval=bound1)
    b1 = jax.random.uniform(k2, (hidden,), dtype, minval=-bound1, maxval=bound1)
    w2 = jax.random.uniform(k3, (hidden, num_classes), dtype,
                            minval=-bound2, maxval=bound2)
    b2 = jax.random.uniform(k4, (num_classes,), dtype,
                            minval=-bound2, maxval=bound2)
    return w1, b1, w2, b2


if __name__ == "__main__":
    NUM_CLASSES = 10
    key = jax.random.PRNGKey(0)

    # --- Test 1: small batch -> gridless fused path -----------------------
    B1, IN1 = 8, 64
    k1, k2, key = jax.random.split(key, 3)
    x1 = jax.random.normal(k1, (B1, IN1), jnp.float32)
    w1, b1, w2, b2 = init_params(k2, IN1, HIDDEN, NUM_CLASSES)
    p1 = prepare_params(w1, b1, w2, b2)       # padded once, reused per call
    out1 = jax.block_until_ready(neural_network_2_2_forward(x1, *p1))
    ref1 = jnp.maximum(x1 @ w1 + b1[None, :], 0.0) @ w2 + b2[None, :]
    assert out1.shape == (B1, NUM_CLASSES)
    assert jnp.allclose(out1, ref1, atol=2e-5, rtol=2e-5)

    # --- Test 2: unaligned batch & D_in -> gridded path with ragged tail --
    B2, IN2 = 300, 100   # D_in not a multiple of 128, B not a multiple of tb
    k3, k4 = jax.random.split(key)
    x2 = jax.random.normal(k3, (B2, IN2), jnp.float32)
    w1b, b1b, w2b, b2b = init_params(k4, IN2, HIDDEN, NUM_CLASSES)
    p2 = prepare_params(w1b, b1b, w2b, b2b)
    out2 = jax.block_until_ready(
        neural_network_2_2_forward(x2, *p2, batch_tile=128,
                                   gridless_max_batch=128))
    ref2 = jnp.maximum(x2 @ w1b + b1b[None, :], 0.0) @ w2b + b2b[None, :]
    assert out2.shape == (B2, NUM_CLASSES)
    assert jnp.allclose(out2, ref2, atol=2e-5, rtol=2e-5)

    print("KERNEL_OK")
</pallas_src>

<mosaic_0001>
module attributes {stable_mosaic.version = 11 : i64} {
  func.func @mlp_kernel(%arg0: memref<8x64xf32, #tpu.memory_space<vmem>>, %arg1: memref<64x256xf32, #tpu.memory_space<vmem>>, %arg2: memref<1x256xf32, #tpu.memory_space<vmem>>, %arg3: memref<256x10xf32, #tpu.memory_space<vmem>>, %arg4: memref<1x10xf32, #tpu.memory_space<vmem>>, %arg5: memref<8x10xf32, #tpu.memory_space<vmem>>) attributes {dimension_semantics = [], scalar_prefetch = 0 : i64, scratch_operands = 0 : i64, tpu.core_type = #tpu.core_type<tc>} {
    %c0 = arith.constant 0 : index
    %c0_0 = arith.constant 0 : index
    %0 = vector.load %arg0[%c0, %c0_0] : memref<8x64xf32, #tpu.memory_space<vmem>>, vector<8x64xf32>
    %c0_1 = arith.constant 0 : index
    %c0_2 = arith.constant 0 : index
    %1 = vector.load %arg1[%c0_1, %c0_2] : memref<64x256xf32, #tpu.memory_space<vmem>>, vector<64x256xf32>
    %cst = arith.constant dense<0.000000e+00> : vector<8x256xf32>
    %2 = tpu.matmul %0, %1, %cst {dimension_numbers = #tpu.dot_dimension_numbers<[1], [0], [0], [1], [0, 0, 1, 1], [], []>} : vector<8x64xf32>, vector<64x256xf32>, vector<8x256xf32> -> vector<8x256xf32>
    %c0_3 = arith.constant 0 : index
    %c0_4 = arith.constant 0 : index
    %3 = vector.load %arg2[%c0_3, %c0_4] : memref<1x256xf32, #tpu.memory_space<vmem>>, vector<1x256xf32>
    %4 = vector.broadcast %3 : vector<1x256xf32> to vector<8x256xf32>
    %5 = arith.addf %2, %4 : vector<8x256xf32>
    %cst_5 = arith.constant 0.000000e+00 : f32
    %6 = vector.broadcast %cst_5 : f32 to vector<8x256xf32>
    %7 = arith.maximumf %5, %6 : vector<8x256xf32>
    %c0_6 = arith.constant 0 : index
    %c0_7 = arith.constant 0 : index
    %8 = vector.load %arg3[%c0_6, %c0_7] : memref<256x10xf32, #tpu.memory_space<vmem>>, vector<256x10xf32>
    %cst_8 = arith.constant dense<0.000000e+00> : vector<8x10xf32>
    %9 = tpu.matmul %7, %8, %cst_8 {dimension_numbers = #tpu.dot_dimension_numbers<[1], [0], [0], [1], [0, 0, 1, 1], [], []>} : vector<8x256xf32>, vector<256x10xf32>, vector<8x10xf32> -> vector<8x10xf32>
    %c0_9 = arith.constant 0 : index
    %c0_10 = arith.constant 0 : index
    %10 = vector.load %arg4[%c0_9, %c0_10] : memref<1x10xf32, #tpu.memory_space<vmem>>, vector<1x10xf32>
    %11 = vector.broadcast %10 : vector<1x10xf32> to vector<8x10xf32>
    %12 = arith.addf %9, %11 : vector<8x10xf32>
    %c0_11 = arith.constant 0 : index
    %c0_12 = arith.constant 0 : index
    %13 = vector.load %arg5[%c0_11, %c0_12] : memref<8x10xf32, #tpu.memory_space<vmem>>, vector<8x10xf32>
    tpu.vector_store %arg5[%c0_11, %c0_12], %12 {strides = array<i32>} : memref<8x10xf32, #tpu.memory_space<vmem>>, vector<8x10xf32>,
    return
  }
}

</mosaic_0001>

<llo_original>
// kernel: tpu_custom_call.1
$region0: #{tpu_custom_call.1}
  #allocation0 [shape = 'u32[]', space=smem, size = 0x4, offset = 0x4, fixed_abs, tag = 'smem constant byte address 0x4 - core index']
  #allocation1 [shape = 'u32[72,128]{1,0:T(1,128)}', space=vmem, size = 0x9000, scoped, tag = 'internal scratch']
  %s0 = inlined_call_operand.vmem [shape: f32[8,64], index: 0, kind: input, shape index: {}]
  %s1 = inlined_call_operand.vmem [shape: f32[64,256], index: 1, kind: input, shape index: {}]
  %s2 = inlined_call_operand.vmem [shape: f32[1,256], index: 2, kind: input, shape index: {}]
  %s3 = inlined_call_operand.vmem [shape: f32[256,10], index: 3, kind: input, shape index: {}]
  %s4 = inlined_call_operand.vmem [shape: f32[1,10], index: 4, kind: input, shape index: {}]
  %s5 = inlined_call_operand.hbm [shape: f32[8,10], index: 5, kind: output, shape index: {}]
  %s6 = sld [smem:[#allocation0]]
  $region30: #{tpu_custom_call.1} parent=0
    _
  %s8 = ssub.s32 1, %s6
  %s9 = scalar_select 0, %s8, %s6
  $region1: #{tpu_custom_call.1} parent=0
    #allocation2 [shape = 'u8[4096]{0}', space=vmem, size = 0x1000, scoped, tag = 'output window, operand 0, single buffered']
    #allocation3 [shape = 's32[1]{0}', space=sflag, size = 0x4, scoped, tag = 'scoped memory for tpu_custom_call.1']
    %10 = vsyncpa [#allocation3], 0
    // Predicated region
    $region2: #{tpu_custom_call.1} parent=1 // pred_check
      _
    $region3: #{tpu_custom_call.1} parent=1 // pred_check_branch
      %12 = sbr.rel (0) target = $region5
    $region4: #{tpu_custom_call.1} parent=1 // pred_region
      _
    $region5: #{tpu_custom_call.1} parent=1 // pred_fallthru
      _
    // Predicated region
    $region6: #{tpu_custom_call.1} parent=1 // pred_check
      _
    $region7: #{tpu_custom_call.1} parent=1 // pred_check_branch
      %14 = sbr.rel (0) target = $region9
    $region8: #{tpu_custom_call.1} parent=1 // pred_region
      _
    $region9: #{tpu_custom_call.1} parent=1 // pred_fallthru
      _
    // Predicated region
    $region10: #{tpu_custom_call.1} parent=1 // pred_check
      _
    $region11: #{tpu_custom_call.1} parent=1 // pred_check_branch
      %16 = sbr.rel (0) target = $region13
    $region12: #{tpu_custom_call.1} parent=1 // pred_region
      _
    $region13: #{tpu_custom_call.1} parent=1 // pred_fallthru
      _
    // Predicated region
    $region14: #{tpu_custom_call.1} parent=1 // pred_check
      _
    $region15: #{tpu_custom_call.1} parent=1 // pred_check_branch
      %18 = sbr.rel (0) target = $region17
    $region16: #{tpu_custom_call.1} parent=1 // pred_region
      _
    $region17: #{tpu_custom_call.1} parent=1 // pred_fallthru
      _
    // Predicated region
    $region18: #{tpu_custom_call.1} parent=1 // pred_check
      _
    $region19: #{tpu_custom_call.1} parent=1 // pred_check_branch
      %20 = sbr.rel (0) target = $region21
    $region20: #{tpu_custom_call.1} parent=1 // pred_region
      _
    $region21: #{tpu_custom_call.1} parent=1 // pred_fallthru
      _
    %v21 = vld [vmem:[%s0] sm:$0xff]
    %v22 = vld [vmem:[%s1] sm:$0xff]
    %v23 = vld [vmem:[%s1 + $0x8] sm:$0xff]
    %v24 = vld [vmem:[%s1 + $0x10] sm:$0xff]
    %v25 = vld [vmem:[%s1 + $0x18] sm:$0xff]
    %v26 = vld [vmem:[%s1 + $0x20] sm:$0xff]
    %v27 = vld [vmem:[%s1 + $0x28] sm:$0xff]
    %v28 = vld [vmem:[%s1 + $0x30] sm:$0xff]
    %v29 = vld [vmem:[%s1 + $0x38] sm:$0xff]
    %v30 = vld [vmem:[%s1 + $0x40] sm:$0xff]
    %v31 = vld [vmem:[%s1 + $0x48] sm:$0xff]
    %v32 = vld [vmem:[%s1 + $0x50] sm:$0xff]
    %v33 = vld [vmem:[%s1 + $0x58] sm:$0xff]
    %v34 = vld [vmem:[%s1 + $0x60] sm:$0xff]
    %v35 = vld [vmem:[%s1 + $0x68] sm:$0xff]
    %v36 = vld [vmem:[%s1 + $0x70] sm:$0xff]
    %v37 = vld [vmem:[%s1 + $0x78] sm:$0xff]
    %v38 = vld [vmem:[%s2] sm:$0x3]
    %v40 = vperm.slane %v38, 0
    %v41 = vperm.slane %v38, 1
    %vm44 = vcmask 523264
    %v46 = vsel %vm44, %v21, 0
    %48 = vmatpush.msra.mxu0 0.0
    %49 = vmatpush.msra.mxu0 0.0
    %50 = vmatpush.msra.mxu0 0.0
    %51 = vmatpush.msra.mxu0 0.0
    %52 = vmatpush.msra.mxu0 0.0
    %53 = vmatpush.msra.mxu0 0.0
    %54 = vmatpush.msra.mxu0 0.0
    %55 = vmatpush.msra.mxu0 0.0
    %56 = vmatpush.msra.mxu0 %v36
    %57 = vmatpush.msra.mxu0 %v34
    %58 = vmatpush.msra.mxu0 %v32
    %59 = vmatpush.msra.mxu0 %v30
    %60 = vmatpush.msra.mxu0 %v28
    %61 = vmatpush.msra.mxu0 %v26
    %62 = vmatpush.msra.mxu0 %v24
    %63 = vmatpush.msra.mxu0 %v22
    %64 = vmatmul.f32.gmra.mxu0 %v46
    %v65 = vpop.f32.mrf.mxu0
    %v66 = vadd.f32 %v40, %v65
    %67 = vdwg.mxu0
    %68 = vmatpush.msra.mxu0 0.0
    %69 = vmatpush.msra.mxu0 0.0
    %70 = vmatpush.msra.mxu0 0.0
    %71 = vmatpush.msra.mxu0 0.0
    %72 = vmatpush.msra.mxu0 0.0
    %73 = vmatpush.msra.mxu0 0.0
    %74 = vmatpush.msra.mxu0 0.0
    %75 = vmatpush.msra.mxu0 0.0
    %76 = vmatpush.msra.mxu0 %v37
    %77 = vmatpush.msra.mxu0 %v35
    %78 = vmatpush.msra.mxu0 %v33
    %79 = vmatpush.msra.mxu0 %v31
    %80 = vmatpush.msra.mxu0 %v29
    %81 = vmatpush.msra.mxu0 %v27
    %82 = vmatpush.msra.mxu0 %v25
    %83 = vmatpush.msra.mxu0 %v23
    %84 = vmatmul.f32.gmra.mxu0 %v46
    %v85 = vpop.f32.mrf.mxu0
    %v86 = vadd.f32 %v41, %v85
    %87 = vdwg.mxu0
    %v88 = vmax.f32 %v66, 0.0
    %v89 = vmax.f32 %v86, 0.0
    %v90 = vld [vmem:[%s3] sm:$0xff]
    %v91 = vld [vmem:[%s3 + $0x8] sm:$0xff]
    %v92 = vld [vmem:[%s3 + $0x10] sm:$0xff]
    %v93 = vld [vmem:[%s3 + $0x18] sm:$0xff]
    %v94 = vld [vmem:[%s3 + $0x20] sm:$0xff]
    %v95 = vld [vmem:[%s3 + $0x28] sm:$0xff]
    %v96 = vld [vmem:[%s3 + $0x30] sm:$0xff]
    %v97 = vld [vmem:[%s3 + $0x38] sm:$0xff]
    %v98 = vld [vmem:[%s3 + $0x40] sm:$0xff]
    %v99 = vld [vmem:[%s3 + $0x48] sm:$0xff]
    %v100 = vld [vmem:[%s3 + $0x50] sm:$0xff]
    %v101 = vld [vmem:[%s3 + $0x58] sm:$0xff]
    %v102 = vld [vmem:[%s3 + $0x60] sm:$0xff]
    %v103 = vld [vmem:[%s3 + $0x68] sm:$0xff]
    %v104 = vld [vmem:[%s3 + $0x70] sm:$0xff]
    %v105 = vld [vmem:[%s3 + $0x78] sm:$0xff]
    %v106 = vld [vmem:[%s3 + $0x80] sm:$0xff]
    %v107 = vld [vmem:[%s3 + $0x88] sm:$0xff]
    %v108 = vld [vmem:[%s3 + $0x90] sm:$0xff]
    %v109 = vld [vmem:[%s3 + $0x98] sm:$0xff]
    %v110 = vld [vmem:[%s3 + $0xa0] sm:$0xff]
    %v111 = vld [vmem:[%s3 + $0xa8] sm:$0xff]
    %v112 = vld [vmem:[%s3 + $0xb0] sm:$0xff]
    %v113 = vld [vmem:[%s3 + $0xb8] sm:$0xff]
    %v114 = vld [vmem:[%s3 + $0xc0] sm:$0xff]
    %v115 = vld [vmem:[%s3 + $0xc8] sm:$0xff]
    %v116 = vld [vmem:[%s3 + $0xd0] sm:$0xff]
    %v117 = vld [vmem:[%s3 + $0xd8] sm:$0xff]
    %v118 = vld [vmem:[%s3 + $0xe0] sm:$0xff]
    %v119 = vld [vmem:[%s3 + $0xe8] sm:$0xff]
    %v120 = vld [vmem:[%s3 + $0xf0] sm:$0xff]
    %v121 = vld [vmem:[%s3 + $0xf8] sm:$0xff]
    %v122 = vld [vmem:[%s4] sm:$0x1]
    %v124 = vperm.slane %v122, 0
    %126 = vmatpush.msra.mxu0 %v105
    %127 = vmatpush.msra.mxu0 %v104
    %128 = vmatpush.msra.mxu0 %v103
    %129 = vmatpush.msra.mxu0 %v102
    %130 = vmatpush.msra.mxu0 %v101
    %131 = vmatpush.msra.mxu0 %v100
    %132 = vmatpush.msra.mxu0 %v99
    %133 = vmatpush.msra.mxu0 %v98
    %134 = vmatpush.msra.mxu0 %v97
    %135 = vmatpush.msra.mxu0 %v96
    %136 = vmatpush.msra.mxu0 %v95
    %137 = vmatpush.msra.mxu0 %v94
    %138 = vmatpush.msra.mxu0 %v93
    %139 = vmatpush.msra.mxu0 %v92
    %140 = vmatpush.msra.mxu0 %v91
    %141 = vmatpush.msra.mxu0 %v90
    %142 = vmatmul.f32.gmra.mxu0 %v88
    %v143 = vpop.f32.mrf.mxu0
    %v144 = vadd.f32 %v124, %v143
    %145 = vdwg.mxu0
    %146 = vmatpush.msra.mxu0 %v121
    %147 = vmatpush.msra.mxu0 %v120
    %148 = vmatpush.msra.mxu0 %v119
    %149 = vmatpush.msra.mxu0 %v118
    %150 = vmatpush.msra.mxu0 %v117
    %151 = vmatpush.msra.mxu0 %v116
    %152 = vmatpush.msra.mxu0 %v115
    %153 = vmatpush.msra.mxu0 %v114
    %154 = vmatpush.msra.mxu0 %v113
    %155 = vmatpush.msra.mxu0 %v112
    %156 = vmatpush.msra.mxu0 %v111
    %157 = vmatpush.msra.mxu0 %v110
    %158 = vmatpush.msra.mxu0 %v109
    %159 = vmatpush.msra.mxu0 %v108
    %160 = vmatpush.msra.mxu0 %v107
    %161 = vmatpush.msra.mxu0 %v106
    %162 = vmatmul.f32.gmra.mxu0 %v89
    %v163 = vpop.f32.mrf.mxu0
    %v164 = vadd.f32 %v144, %v163
    %165 = vdwg.mxu0
    %vm166 = vcmask 80896
    %167 = vst.msk [vmem:[#allocation2] sm:$0xff] %vm166, %v164
    // Predicated region
    $region22: #{tpu_custom_call.1} parent=1 // pred_check
      _
    $region23: #{tpu_custom_call.1} parent=1 // pred_check_branch
      %169 = sbr.rel (0) target = $region25
    $region24: #{tpu_custom_call.1} parent=1 // pred_region
      %171 = vsyncadd [#allocation3], 0
      %s173 = sshll.u32 [#allocation2], 4
      %s174 = int_to_ptr.vmem [resolvable:$true] %s173
      %s175 = sshll.u32 %s5, 4
      %s176 = int_to_ptr.hbm [resolvable:$true] %s175
      %178 = dma.vmem_to_hbm [thread:$0]  %s174, 128, %s176, [#allocation3]
    $region25: #{tpu_custom_call.1} parent=1 // pred_fallthru
      _
    // Predicated region
    $region26: #{tpu_custom_call.1} parent=1 // pred_check
      _
    $region27: #{tpu_custom_call.1} parent=1 // pred_check_branch
      %180 = sbr.rel (0) target = $region29
    $region28: #{tpu_custom_call.1} parent=1 // pred_region
      %182 = dma.done [#allocation3], 128
    $region29: #{tpu_custom_call.1} parent=1 // pred_fallthru
      _
    %183 = vsyncpa [#allocation3], 1

</llo_original>
